<compile_context>
chip_gen: v7x
topology: tpu7x:2x2x1
jax: 0.10.0
libtpu: 0.0.40
codegen_flags: <defaults>
</compile_context>

<pallas_src>
import functools

import jax
import jax.numpy as jnp
from jax import lax
from jax.experimental import pallas as pl
from jax.experimental.pallas import tpu as pltpu

LN_EPS = 1e-5  # torch.nn.LayerNorm default eps


def _dss_k_kernel(wr_ref, wi_ref, sr_ref, si_ref, cr_ref, ci_ref, k_ref):
    """K[l, d] = Re( sum_n C'[d, n] * exp(Lambda_n * l) ),  C' = C*(exp(Lambda)-1)/Lambda."""
    wr = wr_ref[...]          # (1, N)   Re((exp(Lambda)-1)/Lambda)
    wi = wi_ref[...]          # (1, N)   Im((exp(Lambda)-1)/Lambda)
    cr = cr_ref[...]          # (D_pad, N)
    ci = ci_ref[...]          # (D_pad, N)
    cpr = cr * wr - ci * wi   # Re(C')
    cpi = cr * wi + ci * wr   # Im(C')
    dn = (((1,), (1,)), ((), ()))   # contract last dims ("A @ B^T")
    k = (lax.dot_general(sr_ref[...], cpr, dn, preferred_element_type=jnp.float32)
         - lax.dot_general(si_ref[...], cpi, dn, preferred_element_type=jnp.float32))
    k_ref[...] = k.astype(k_ref.dtype)          # (L, D_pad), lane-dense store


def _dss_conv_kernel(x_ref, gamma_ref, beta_ref, pd_ref, k_ref, o_ref, *, d_true):
    # x_ref: (1, L, D_pad)  gamma/beta/pd: (1, D_pad)  k: (L, D_pad)  o: (1, L, D_pad)
    L, d_pad = k_ref.shape
    x = x_ref[0]                                               # (L, D_pad)

    # ---- LayerNorm over the true D lanes (padded lanes of x are zero) ----
    lane = lax.broadcasted_iota(jnp.int32, (1, d_pad), 1)
    lane_mask = lane < d_true
    inv_d = 1.0 / d_true
    mean = jnp.sum(x, axis=-1, keepdims=True) * inv_d
    xc = jnp.where(lane_mask, x - mean, 0.0)                   # zero padded lanes
    var = jnp.sum(xc * xc, axis=-1, keepdims=True) * inv_d
    u = xc * lax.rsqrt(var + LN_EPS) * gamma_ref[...] + beta_ref[...]   # (L, D_pad)

    acc = u * pd_ref[...]                                      # residual = u * param_D
    k = k_ref[...]                                             # (L, D_pad)

    # ---- causal conv:  y[t] += K[m] * u[t-m]  (roll on the XLU, mul-add on the VPU)
    # Statically unrolled: L is small and static here.
    # TODO(synk): for long sequences replace this O(L^2) unrolled loop with a
    # chunked block-Toeplitz / SSM-state recurrence over an L grid axis.
    row = lax.broadcasted_iota(jnp.int32, (L, 1), 0)
    acc = acc + u * k[0:1, :]
    for m in range(1, L):
        shifted = jnp.where(row >= m, pltpu.roll(u, shift=m, axis=0), 0.0)
        acc = acc + shifted * k[m:m + 1, :]

    o_ref[0] = acc.astype(o_ref.dtype)                         # single lane-dense store


def dss_forward(x, params):
    lr = params["Lambda_real"]
    li = params["Lambda_imag"]
    cr = params["C_real"]
    ci = params["C_imag"]
    pd = params["param_D"]
    gamma = params["ln_weight"]
    beta = params["ln_bias"]

    B, L, D = x.shape
    D_pad = ((D + 127) // 128) * 128       # lane-align so all kernel stores are unmasked
    pad = D_pad - D

    # ---- parameter-setup glue (plain JAX): split complex Lambda math into real tables ----
    a = -jnp.exp(lr)                       # Re(Lambda)
    bim = jnp.exp(li)                      # Im(Lambda)  (dss_kernel_lambda_imag_exp=True)
    ea = jnp.exp(a)
    num_r = ea * jnp.cos(bim) - 1.0
    num_i = ea * jnp.sin(bim)
    den = a * a + bim * bim
    wr = (num_r * a + num_i * bim) / den   # Re((exp(Lambda)-1)/Lambda)
    wi = (num_i * a - num_r * bim) / den   # Im((exp(Lambda)-1)/Lambda)

    t = jnp.arange(L, dtype=jnp.float32)[:, None]              # (L, 1)
    et = jnp.exp(a[None, :] * t)                               # (L, N)
    sr = et * jnp.cos(bim[None, :] * t)                        # Re(exp(Lambda * t))
    si = et * jnp.sin(bim[None, :] * t)                        # Im(exp(Lambda * t))

    # ---- zero-pad the channel dim to a lane multiple (padded lanes stay exactly 0) ----
    x_p = jnp.pad(x, ((0, 0), (0, 0), (0, pad)))
    cr_p = jnp.pad(cr, ((0, pad), (0, 0)))
    ci_p = jnp.pad(ci, ((0, pad), (0, 0)))
    pd_p = jnp.pad(pd, (0, pad))[None, :]
    gamma_p = jnp.pad(gamma, (0, pad))[None, :]
    beta_p = jnp.pad(beta, (0, pad))[None, :]

    vmem = pl.BlockSpec(memory_space=pltpu.MemorySpace.VMEM)

    # ---- kernel 1: x-independent K table (runs once, MXU matmul over N) ----
    k_tab = pl.pallas_call(
        _dss_k_kernel,
        out_shape=jax.ShapeDtypeStruct((L, D_pad), jnp.float32),
        in_specs=[vmem] * 6,
        out_specs=vmem,
        compiler_params=pltpu.CompilerParams(vmem_limit_bytes=32 * 1024 * 1024),
    )(wr[None, :], wi[None, :], sr, si, cr_p, ci_p)

    # ---- kernel 2: LayerNorm + residual + causal conv, gridded over batch ----
    flops = B * L * D_pad * (3 * L + 12)
    bytes_accessed = 4 * (2 * B * L * D_pad + L * D_pad + 3 * D_pad)
    y_p = pl.pallas_call(
        functools.partial(_dss_conv_kernel, d_true=D),
        out_shape=jax.ShapeDtypeStruct((B, L, D_pad), x.dtype),
        grid_spec=pltpu.PrefetchScalarGridSpec(
            num_scalar_prefetch=0,
            grid=(B,),
            in_specs=[
                pl.BlockSpec((1, L, D_pad), lambda b: (b, 0, 0)),   # x (per-batch tile)
                pl.BlockSpec((1, D_pad), lambda b: (0, 0)),         # gamma (resident)
                pl.BlockSpec((1, D_pad), lambda b: (0, 0)),         # beta
                pl.BlockSpec((1, D_pad), lambda b: (0, 0)),         # param_D
                pl.BlockSpec((L, D_pad), lambda b: (0, 0)),         # K table
            ],
            out_specs=pl.BlockSpec((1, L, D_pad), lambda b: (b, 0, 0)),
        ),
        compiler_params=pltpu.CompilerParams(
            dimension_semantics=("parallel",),
            vmem_limit_bytes=32 * 1024 * 1024,
        ),
        cost_estimate=pl.CostEstimate(
            flops=flops, transcendentals=B * L, bytes_accessed=bytes_accessed),
    )(x_p, gamma_p, beta_p, pd_p, k_tab)

    return y_p[:, :, :D]


def dss_reference(x, params):
    """Pure-JAX transcription of the PyTorch forward (FFT path), for checking."""
    lr = params["Lambda_real"]
    li = params["Lambda_imag"]
    cr = params["C_real"]
    ci = params["C_imag"]
    pd = params["param_D"]
    gamma = params["ln_weight"]
    beta = params["ln_bias"]

    L = x.shape[1]
    mean = x.mean(-1, keepdims=True)
    var = ((x - mean) ** 2).mean(-1, keepdims=True)
    u = (x - mean) / jnp.sqrt(var + LN_EPS) * gamma + beta
    residual = u * pd

    Lam = -jnp.exp(lr) + 1j * jnp.exp(li)
    C = (cr + 1j * ci) * ((jnp.exp(Lam) - 1.0) / Lam)[None, :]
    ar = jnp.arange(L)
    S = jnp.exp(Lam[:, None] * ar[None, :])              # (N, L)
    K = jnp.einsum('hn,nl->lh', C, S).real.astype(x.dtype)

    u_f = jnp.fft.rfft(u, n=2 * L, axis=-2)
    K_f = jnp.fft.rfft(K, n=2 * L, axis=-2)
    y = jnp.fft.irfft(u_f * K_f, 2 * L, axis=-2)[..., :L, :]
    return (y + residual).astype(x.dtype)


if __name__ == "__main__":
    B, L, D, N = 2, 8, 32, 512
    key = jax.random.PRNGKey(0)
    ks = jax.random.split(key, 6)
    params = {
        "Lambda_real": jax.random.normal(ks[0], (N,), jnp.float32),
        "Lambda_imag": jax.random.normal(ks[1], (N,), jnp.float32),
        "C_real": jax.random.normal(ks[2], (D, N), jnp.float32),
        "C_imag": jax.random.normal(ks[3], (D, N), jnp.float32),
        "param_D": jax.random.normal(ks[4], (D,), jnp.float32),
        "ln_weight": jnp.ones((D,), jnp.float32),   # nn.LayerNorm default init
        "ln_bias": jnp.zeros((D,), jnp.float32),
    }
    x = jax.random.normal(ks[5], (B, L, D), jnp.float32)

    y = jax.block_until_ready(dss_forward(x, params))
    y_ref = jax.block_until_ready(dss_reference(x, params))

    err = float(jnp.max(jnp.abs(y - y_ref)))
    scale = float(jnp.max(jnp.abs(y_ref))) + 1e-6
    if err / scale > 2e-3:
        raise AssertionError(f"DSS kernel mismatch: max abs err {err}, ref scale {scale}")
    print("KERNEL_OK")
</pallas_src>

<mosaic_0001>
module attributes {stable_mosaic.version = 11 : i64} {
  func.func @_dss_k_kernel(%arg0: memref<1x512xf32, #tpu.memory_space<vmem>>, %arg1: memref<1x512xf32, #tpu.memory_space<vmem>>, %arg2: memref<8x512xf32, #tpu.memory_space<vmem>>, %arg3: memref<8x512xf32, #tpu.memory_space<vmem>>, %arg4: memref<128x512xf32, #tpu.memory_space<vmem>>, %arg5: memref<128x512xf32, #tpu.memory_space<vmem>>, %arg6: memref<8x128xf32, #tpu.memory_space<vmem>>) attributes {dimension_semantics = [], scalar_prefetch = 0 : i64, scratch_operands = 0 : i64, tpu.core_type = #tpu.core_type<tc>} {
    %c0 = arith.constant 0 : index
    %c0_0 = arith.constant 0 : index
    %0 = vector.load %arg0[%c0, %c0_0] : memref<1x512xf32, #tpu.memory_space<vmem>>, vector<1x512xf32>
    %c0_1 = arith.constant 0 : index
    %c0_2 = arith.constant 0 : index
    %1 = vector.load %arg1[%c0_1, %c0_2] : memref<1x512xf32, #tpu.memory_space<vmem>>, vector<1x512xf32>
    %c0_3 = arith.constant 0 : index
    %c0_4 = arith.constant 0 : index
    %2 = vector.load %arg4[%c0_3, %c0_4] : memref<128x512xf32, #tpu.memory_space<vmem>>, vector<128x512xf32>
    %c0_5 = arith.constant 0 : index
    %c0_6 = arith.constant 0 : index
    %3 = vector.load %arg5[%c0_5, %c0_6] : memref<128x512xf32, #tpu.memory_space<vmem>>, vector<128x512xf32>
    %4 = vector.broadcast %0 : vector<1x512xf32> to vector<128x512xf32>
    %5 = arith.mulf %2, %4 : vector<128x512xf32>
    %6 = vector.broadcast %1 : vector<1x512xf32> to vector<128x512xf32>
    %7 = arith.mulf %3, %6 : vector<128x512xf32>
    %8 = arith.subf %5, %7 : vector<128x512xf32>
    %9 = vector.broadcast %1 : vector<1x512xf32> to vector<128x512xf32>
    %10 = arith.mulf %2, %9 : vector<128x512xf32>
    %11 = vector.broadcast %0 : vector<1x512xf32> to vector<128x512xf32>
    %12 = arith.mulf %3, %11 : vector<128x512xf32>
    %13 = arith.addf %10, %12 : vector<128x512xf32>
    %c0_7 = arith.constant 0 : index
    %c0_8 = arith.constant 0 : index
    %14 = vector.load %arg2[%c0_7, %c0_8] : memref<8x512xf32, #tpu.memory_space<vmem>>, vector<8x512xf32>
    %cst = arith.constant dense<0.000000e+00> : vector<8x128xf32>
    %15 = tpu.matmul %14, %8, %cst {dimension_numbers = #tpu.dot_dimension_numbers<[1], [1], [0], [0], [0, 0, 1, 0], [], []>} : vector<8x512xf32>, vector<128x512xf32>, vector<8x128xf32> -> vector<8x128xf32>
    %c0_9 = arith.constant 0 : index
    %c0_10 = arith.constant 0 : index
    %16 = vector.load %arg3[%c0_9, %c0_10] : memref<8x512xf32, #tpu.memory_space<vmem>>, vector<8x512xf32>
    %cst_11 = arith.constant dense<0.000000e+00> : vector<8x128xf32>
    %17 = tpu.matmul %16, %13, %cst_11 {dimension_numbers = #tpu.dot_dimension_numbers<[1], [1], [0], [0], [0, 0, 1, 0], [], []>} : vector<8x512xf32>, vector<128x512xf32>, vector<8x128xf32> -> vector<8x128xf32>
    %18 = arith.subf %15, %17 : vector<8x128xf32>
    %c0_12 = arith.constant 0 : index
    %c0_13 = arith.constant 0 : index
    %19 = vector.load %arg6[%c0_12, %c0_13] : memref<8x128xf32, #tpu.memory_space<vmem>>, vector<8x128xf32>
    tpu.vector_store %arg6[%c0_12, %c0_13], %18 {strides = array<i32>} : memref<8x128xf32, #tpu.memory_space<vmem>>, vector<8x128xf32>,
    return
  }
}

</mosaic_0001>

<llo_original>
// kernel: tpu_custom_call.1
$region0: #{tpu_custom_call.1}
  #allocation0 [shape = 'u32[]', space=smem, size = 0x4, offset = 0x4, fixed_abs, tag = 'smem constant byte address 0x4 - core index']
  #allocation1 [shape = 'u32[144,128]{1,0:T(1,128)}', space=vmem, size = 0x12000, scoped, tag = 'internal scratch']
  %s0 = inlined_call_operand.hbm [shape: f32[1,512], index: 0, kind: input, shape index: {}]
  %s1 = inlined_call_operand.hbm [shape: f32[1,512], index: 1, kind: input, shape index: {}]
  %s2 = inlined_call_operand.hbm [shape: f32[8,512], index: 2, kind: input, shape index: {}]
  %s3 = inlined_call_operand.hbm [shape: f32[8,512], index: 3, kind: input, shape index: {}]
  %s4 = inlined_call_operand.hbm [shape: f32[128,512], index: 4, kind: input, shape index: {}]
  %s5 = inlined_call_operand.hbm [shape: f32[128,512], index: 5, kind: input, shape index: {}]
  %s6 = inlined_call_operand.hbm [shape: f32[8,128], index: 6, kind: output, shape index: {}]
  %s7 = sld [smem:[#allocation0]]
  $region58: #{tpu_custom_call.1} parent=0
    _
  %s9 = ssub.s32 1, %s7
  %s10 = scalar_select 0, %s9, %s7
  $region1: #{tpu_custom_call.1} parent=0
    #allocation2 [shape = 'u8[2048]{0}', space=vmem, size = 0x800, scoped, tag = 'input window, operand 0, single buffered']
    #allocation3 [shape = 's32[1]{0}', space=sflag, size = 0x4, scoped, tag = 'scoped memory for tpu_custom_call.1']
    #allocation4 [shape = 's32[1]{0}', space=sflag, size = 0x4, scoped, tag = 'scoped memory for tpu_custom_call.1']
    #allocation5 [shape = 'u8[2048]{0}', space=vmem, size = 0x800, scoped, tag = 'input window, operand 1, single buffered']
    #allocation6 [shape = 's32[1]{0}', space=sflag, size = 0x4, scoped, tag = 'scoped memory for tpu_custom_call.1']
    #allocation7 [shape = 'u8[16384]{0}', space=vmem, size = 0x4000, scoped, tag = 'input window, operand 2, single buffered']
    #allocation8 [shape = 'u8[16384]{0}', space=vmem, size = 0x4000, scoped, tag = 'input window, operand 3, single buffered']
    #allocation9 [shape = 's32[1]{0}', space=sflag, size = 0x4, scoped, tag = 'scoped memory for tpu_custom_call.1']
    #allocation10 [shape = 'u8[262144]{0}', space=vmem, size = 0x40000, scoped, tag = 'input window, operand 4, single buffered']
    #allocation11 [shape = 'u8[262144]{0}', space=vmem, size = 0x40000, scoped, tag = 'input window, operand 5, single buffered']
    #allocation12 [shape = 's32[1]{0}', space=sflag, size = 0x4, scoped, tag = 'scoped memory for tpu_custom_call.1']
    #allocation13 [shape = 'u8[4096]{0}', space=vmem, size = 0x1000, scoped, tag = 'output window, operand 0, single buffered']
    %11 = vsyncpa [#allocation3], 0
    %12 = vsyncpa [#allocation6], 0
    %13 = vsyncpa [#allocation9], 0
    %14 = vsyncpa [#allocation12], 0
    %15 = vsyncpa [#allocation4], 0
    // Predicated region
    $region2: #{tpu_custom_call.1} parent=1 // pred_check
      _
    $region3: #{tpu_custom_call.1} parent=1 // pred_check_branch
      %17 = sbr.rel (0) target = $region5
    $region4: #{tpu_custom_call.1} parent=1 // pred_region
      %s19 = ssub.s32 64, 64
      %20 = vsyncadd [#allocation3], %s19
      %s22 = sshll.u32 [#allocation2], 4
      %s23 = int_to_ptr.vmem [resolvable:$true] %s22
      %25 = dma.hbm_to_vmem [thread:$0]  %s0, 64, %s23, [#allocation3]
    $region5: #{tpu_custom_call.1} parent=1 // pred_fallthru
      _
    // Predicated region
    $region6: #{tpu_custom_call.1} parent=1 // pred_check
      _
    $region7: #{tpu_custom_call.1} parent=1 // pred_check_branch
      %27 = sbr.rel (0) target = $region9
    $region8: #{tpu_custom_call.1} parent=1 // pred_region
      %s29 = ssub.s32 64, 64
      %30 = vsyncadd [#allocation6], %s29
      %s32 = sshll.u32 [#allocation5], 4
      %s33 = int_to_ptr.vmem [resolvable:$true] %s32
      %35 = dma.hbm_to_vmem [thread:$0]  %s1, 64, %s33, [#allocation6]
    $region9: #{tpu_custom_call.1} parent=1 // pred_fallthru
      _
    // Predicated region
    $region10: #{tpu_custom_call.1} parent=1 // pred_check
      _
    $region11: #{tpu_custom_call.1} parent=1 // pred_check_branch
      %37 = sbr.rel (0) target = $region13
    $region12: #{tpu_custom_call.1} parent=1 // pred_region
      %s39 = ssub.s32 512, 512
      %40 = vsyncadd [#allocation6], %s39
      %s42 = sshll.u32 [#allocation7], 4
      %s43 = int_to_ptr.vmem [resolvable:$true] %s42
      %45 = dma.hbm_to_vmem [thread:$0]  %s2, 512, %s43, [#allocation6]
    $region13: #{tpu_custom_call.1} parent=1 // pred_fallthru
      _
    // Predicated region
    $region14: #{tpu_custom_call.1} parent=1 // pred_check
      _
    $region15: #{tpu_custom_call.1} parent=1 // pred_check_branch
      %47 = sbr.rel (0) target = $region17
    $region16: #{tpu_custom_call.1} parent=1 // pred_region
      %s49 = ssub.s32 512, 512
      %50 = vsyncadd [#allocation9], %s49
      %s52 = sshll.u32 [#allocation8], 4
      %s53 = int_to_ptr.vmem [resolvable:$true] %s52
      %55 = dma.hbm_to_vmem [thread:$0]  %s3, 512, %s53, [#allocation9]
    $region17: #{tpu_custom_call.1} parent=1 // pred_fallthru
      _
    // Predicated region
    $region18: #{tpu_custom_call.1} parent=1 // pred_check
      _
    $region19: #{tpu_custom_call.1} parent=1 // pred_check_branch
      %57 = sbr.rel (0) target = $region21
    $region20: #{tpu_custom_call.1} parent=1 // pred_region
      %s59 = ssub.s32 8192, 8192
      %60 = vsyncadd [#allocation9], %s59
      %s61 = sshll.u32 [#allocation10], 4
      %s62 = int_to_ptr.vmem [resolvable:$true] %s61
      %67 = dma.hbm_to_vmem [thread:$0]  %s4, 8192, %s62, [#allocation9], 512, 512, 32
    $region21: #{tpu_custom_call.1} parent=1 // pred_fallthru
      _
    // Predicated region
    $region22: #{tpu_custom_call.1} parent=1 // pred_check
      _
    $region23: #{tpu_custom_call.1} parent=1 // pred_check_branch
      %69 = sbr.rel (0) target = $region25
    $region24: #{tpu_custom_call.1} parent=1 // pred_region
      %s71 = ssub.s32 8192, 8192
      %72 = vsyncadd [#allocation12], %s71
      %s73 = sshll.u32 [#allocation11], 4
      %s74 = int_to_ptr.vmem [resolvable:$true] %s73
      %79 = dma.hbm_to_vmem [thread:$0]  %s5, 8192, %s74, [#allocation12], 512, 512, 32
    $region25: #{tpu_custom_call.1} parent=1 // pred_fallthru
      _
    // Predicated region
    $region26: #{tpu_custom_call.1} parent=1 // pred_check
      _
    $region27: #{tpu_custom_call.1} parent=1 // pred_check_branch
      %81 = sbr.rel (0) target = $region29
    $region28: #{tpu_custom_call.1} parent=1 // pred_region
      %82 = dma.done [#allocation3], 64
    $region29: #{tpu_custom_call.1} parent=1 // pred_fallthru
      _
    // Predicated region
    $region30: #{tpu_custom_call.1} parent=1 // pred_check
      _
    $region31: #{tpu_custom_call.1} parent=1 // pred_check_branch
      %84 = sbr.rel (0) target = $region33
    $region32: #{tpu_custom_call.1} parent=1 // pred_region
      %85 = dma.done [#allocation6], 64
    $region33: #{tpu_custom_call.1} parent=1 // pred_fallthru
      _
    // Predicated region
    $region34: #{tpu_custom_call.1} parent=1 // pred_check
      _
    $region35: #{tpu_custom_call.1} parent=1 // pred_check_branch
      %87 = sbr.rel (0) target = $region37
    $region36: #{tpu_custom_call.1} parent=1 // pred_region
      %88 = dma.done [#allocation6], 512
    $region37: #{tpu_custom_call.1} parent=1 // pred_fallthru
      _
    // Predicated region
    $region38: #{tpu_custom_call.1} parent=1 // pred_check
      _
    $region39: #{tpu_custom_call.1} parent=1 // pred_check_branch
      %90 = sbr.rel (0) target = $region41
    $region40: #{tpu_custom_call.1} parent=1 // pred_region
      %91 = dma.done [#allocation9], 512
    $region41: #{tpu_custom_call.1} parent=1 // pred_fallthru
      _
    // Predicated region
    $region42: #{tpu_custom_call.1} parent=1 // pred_check
      _
    $region43: #{tpu_custom_call.1} parent=1 // pred_check_branch
      %93 = sbr.rel (0) target = $region45
    $region44: #{tpu_custom_call.1} parent=1 // pred_region
      %94 = dma.done [#allocation9], 8192
    $region45: #{tpu_custom_call.1} parent=1 // pred_fallthru
      _
    // Predicated region
    $region46: #{tpu_custom_call.1} parent=1 // pred_check
      _
    $region47: #{tpu_custom_call.1} parent=1 // pred_check_branch
      %96 = sbr.rel (0) target = $region49
    $region48: #{tpu_custom_call.1} parent=1 // pred_region
      %97 = dma.done [#allocation12], 8192
    $region49: #{tpu_custom_call.1} parent=1 // pred_fallthru
      _
    %v98 = vld [vmem:[#allocation2] sm:$0xf]
    %v99 = vld [vmem:[#allocation5] sm:$0xf]
    %v100 = vld [vmem:[#allocation10] sm:$0xff]
    %v101 = vld [vmem:[#allocation10 + $0x8] sm:$0xff]
    %v102 = vld [vmem:[#allocation10 + $0x10] sm:$0xff]
    %v103 = vld [vmem:[#allocation10 + $0x18] sm:$0xff]
    %v104 = vld [vmem:[#allocation10 + $0x20] sm:$0xff]
    %v105 = vld [vmem:[#allocation10 + $0x28] sm:$0xff]
    %v106 = vld [vmem:[#allocation10 + $0x30] sm:$0xff]
    %v107 = vld [vmem:[#allocation10 + $0x38] sm:$0xff]
    %v108 = vld [vmem:[#allocation10 + $0x40] sm:$0xff]
    %v109 = vld [vmem:[#allocation10 + $0x48] sm:$0xff]
    %v110 = vld [vmem:[#allocation10 + $0x50] sm:$0xff]
    %v111 = vld [vmem:[#allocation10 + $0x58] sm:$0xff]
    %v112 = vld [vmem:[#allocation10 + $0x60] sm:$0xff]
    %v113 = vld [vmem:[#allocation10 + $0x68] sm:$0xff]
    %v114 = vld [vmem:[#allocation10 + $0x70] sm:$0xff]
    %v115 = vld [vmem:[#allocation10 + $0x78] sm:$0xff]
    %v116 = vld [vmem:[#allocation10 + $0x80] sm:$0xff]
    %v117 = vld [vmem:[#allocation10 + $0x88] sm:$0xff]
    %v118 = vld [vmem:[#allocation10 + $0x90] sm:$0xff]
    %v119 = vld [vmem:[#allocation10 + $0x98] sm:$0xff]
    %v120 = vld [vmem:[#allocation10 + $0xa0] sm:$0xff]
    %v121 = vld [vmem:[#allocation10 + $0xa8] sm:$0xff]
    %v122 = vld [vmem:[#allocation10 + $0xb0] sm:$0xff]
    %v123 = vld [vmem:[#allocation10 + $0xb8] sm:$0xff]
    %v124 = vld [vmem:[#allocation10 + $0xc0] sm:$0xff]
    %v125 = vld [vmem:[#allocation10 + $0xc8] sm:$0xff]
    %v126 = vld [vmem:[#allocation10 + $0xd0] sm:$0xff]
    %v127 = vld [vmem:[#allocation10 + $0xd8] sm:$0xff]
    %v128 = vld [vmem:[#allocation10 + $0xe0] sm:$0xff]
    %v129 = vld [vmem:[#allocation10 + $0xe8] sm:$0xff]
    %v130 = vld [vmem:[#allocation10 + $0xf0] sm:$0xff]
    %v131 = vld [vmem:[#allocation10 + $0xf8] sm:$0xff]
    %v132 = vld [vmem:[#allocation10 + $0x100] sm:$0xff]
    %v133 = vld [vmem:[#allocation10 + $0x108] sm:$0xff]
    %v134 = vld [vmem:[#allocation10 + $0x110] sm:$0xff]
    %v135 = vld [vmem:[#allocation10 + $0x118] sm:$0xff]
    %v136 = vld [vmem:[#allocation10 + $0x120] sm:$0xff]
    %v137 = vld [vmem:[#allocation10 + $0x128] sm:$0xff]
    %v138 = vld [vmem:[#allocation10 + $0x130] sm:$0xff]
    %v139 = vld [vmem:[#allocation10 + $0x138] sm:$0xff]
    %v140 = vld [vmem:[#allocation10 + $0x140] sm:$0xff]
    %v141 = vld [vmem:[#allocation10 + $0x148] sm:$0xff]
    %v142 = vld [vmem:[#allocation10 + $0x150] sm:$0xff]
    %v143 = vld [vmem:[#allocation10 + $0x158] sm:$0xff]
    %v144 = vld [vmem:[#allocation10 + $0x160] sm:$0xff]
    %v145 = vld [vmem:[#allocation10 + $0x168] sm:$0xff]
    %v146 = vld [vmem:[#allocation10 + $0x170] sm:$0xff]
    %v147 = vld [vmem:[#allocation10 + $0x178] sm:$0xff]
    %v148 = vld [vmem:[#allocation10 + $0x180] sm:$0xff]
    %v149 = vld [vmem:[#allocation10 + $0x188] sm:$0xff]
    %v150 = vld [vmem:[#allocation10 + $0x190] sm:$0xff]
    %v151 = vld [vmem:[#allocation10 + $0x198] sm:$0xff]
    %v152 = vld [vmem:[#allocation10 + $0x1a0] sm:$0xff]
    %v153 = vld [vmem:[#allocation10 + $0x1a8] sm:$0xff]
    %v154 = vld [vmem:[#allocation10 + $0x1b0] sm:$0xff]
    %v155 = vld [vmem:[#allocation10 + $0x1b8] sm:$0xff]
    %v156 = vld [vmem:[#allocation10 + $0x1c0] sm:$0xff]
    %v157 = vld [vmem:[#allocation10 + $0x1c8] sm:$0xff]
    %v158 = vld [vmem:[#allocation10 + $0x1d0] sm:$0xff]
    %v159 = vld [vmem:[#allocation10 + $0x1d8] sm:$0xff]
    %v160 = vld [vmem:[#allocation10 + $0x1e0] sm:$0xff]
    %v161 = vld [vmem:[#allocation10 + $0x1e8] sm:$0xff]
    %v162 = vld [vmem:[#allocation10 + $0x1f0] sm:$0xff]
    %v163 = vld [vmem:[#allocation10 + $0x1f8] sm:$0xff]
    %v164 = vld [vmem:[#allocation11] sm:$0xff]
    %v165 = vld [vmem:[#allocation11 + $0x8] sm:$0xff]
    %v166 = vld [vmem:[#allocation11 + $0x10] sm:$0xff]
    %v167 = vld [vmem:[#allocation11 + $0x18] sm:$0xff]
    %v168 = vld [vmem:[#allocation11 + $0x20] sm:$0xff]
    %v169 = vld [vmem:[#allocation11 + $0x28] sm:$0xff]
    %v170 = vld [vmem:[#allocation11 + $0x30] sm:$0xff]
    %v171 = vld [vmem:[#allocation11 + $0x38] sm:$0xff]
    %v172 = vld [vmem:[#allocation11 + $0x40] sm:$0xff]
    %v173 = vld [vmem:[#allocation11 + $0x48] sm:$0xff]
    %v174 = vld [vmem:[#allocation11 + $0x50] sm:$0xff]
    %v175 = vld [vmem:[#allocation11 + $0x58] sm:$0xff]
    %v176 = vld [vmem:[#allocation11 + $0x60] sm:$0xff]
    %v177 = vld [vmem:[#allocation11 + $0x68] sm:$0xff]
    %v178 = vld [vmem:[#allocation11 + $0x70] sm:$0xff]
    %v179 = vld [vmem:[#allocation11 + $0x78] sm:$0xff]
    %v180 = vld [vmem:[#allocation11 + $0x80] sm:$0xff]
    %v181 = vld [vmem:[#allocation11 + $0x88] sm:$0xff]
    %v182 = vld [vmem:[#allocation11 + $0x90] sm:$0xff]
    %v183 = vld [vmem:[#allocation11 + $0x98] sm:$0xff]
    %v184 = vld [vmem:[#allocation11 + $0xa0] sm:$0xff]
    %v185 = vld [vmem:[#allocation11 + $0xa8] sm:$0xff]
    %v186 = vld [vmem:[#allocation11 + $0xb0] sm:$0xff]
    %v187 = vld [vmem:[#allocation11 + $0xb8] sm:$0xff]
    %v188 = vld [vmem:[#allocation11 + $0xc0] sm:$0xff]
    %v189 = vld [vmem:[#allocation11 + $0xc8] sm:$0xff]
    %v190 = vld [vmem:[#allocation11 + $0xd0] sm:$0xff]
    %v191 = vld [vmem:[#allocation11 + $0xd8] sm:$0xff]
    %v192 = vld [vmem:[#allocation11 + $0xe0] sm:$0xff]
    %v193 = vld [vmem:[#allocation11 + $0xe8] sm:$0xff]
    %v194 = vld [vmem:[#allocation11 + $0xf0] sm:$0xff]
    %v195 = vld [vmem:[#allocation11 + $0xf8] sm:$0xff]
    %v196 = vld [vmem:[#allocation11 + $0x100] sm:$0xff]
    %v197 = vld [vmem:[#allocation11 + $0x108] sm:$0xff]
    %v198 = vld [vmem:[#allocation11 + $0x110] sm:$0xff]
    %v199 = vld [vmem:[#allocation11 + $0x118] sm:$0xff]
    %v200 = vld [vmem:[#allocation11 + $0x120] sm:$0xff]
    %v201 = vld [vmem:[#allocation11 + $0x128] sm:$0xff]
    %v202 = vld [vmem:[#allocation11 + $0x130] sm:$0xff]
    %v203 = vld [vmem:[#allocation11 + $0x138] sm:$0xff]
    %v204 = vld [vmem:[#allocation11 + $0x140] sm:$0xff]
    %v205 = vld [vmem:[#allocation11 + $0x148] sm:$0xff]
    %v206 = vld [vmem:[#allocation11 + $0x150] sm:$0xff]
    %v207 = vld [vmem:[#allocation11 + $0x158] sm:$0xff]
    %v208 = vld [vmem:[#allocation11 + $0x160] sm:$0xff]
    %v209 = vld [vmem:[#allocation11 + $0x168] sm:$0xff]
    %v210 = vld [vmem:[#allocation11 + $0x170] sm:$0xff]
    %v211 = vld [vmem:[#allocation11 + $0x178] sm:$0xff]
    %v212 = vld [vmem:[#allocation11 + $0x180] sm:$0xff]
    %v213 = vld [vmem:[#allocation11 + $0x188] sm:$0xff]
    %v214 = vld [vmem:[#allocation11 + $0x190] sm:$0xff]
    %v215 = vld [vmem:[#allocation11 + $0x198] sm:$0xff]
    %v216 = vld [vmem:[#allocation11 + $0x1a0] sm:$0xff]
    %v217 = vld [vmem:[#allocation11 + $0x1a8] sm:$0xff]
    %v218 = vld [vmem:[#allocation11 + $0x1b0] sm:$0xff]
    %v219 = vld [vmem:[#allocation11 + $0x1b8] sm:$0xff]
    %v220 = vld [vmem:[#allocation11 + $0x1c0] sm:$0xff]
    %v221 = vld [vmem:[#allocation11 + $0x1c8] sm:$0xff]
    %v222 = vld [vmem:[#allocation11 + $0x1d0] sm:$0xff]
    %v223 = vld [vmem:[#allocation11 + $0x1d8] sm:$0xff]
    %v224 = vld [vmem:[#allocation11 + $0x1e0] sm:$0xff]
    %v225 = vld [vmem:[#allocation11 + $0x1e8] sm:$0xff]
    %v226 = vld [vmem:[#allocation11 + $0x1f0] sm:$0xff]
    %v227 = vld [vmem:[#allocation11 + $0x1f8] sm:$0xff]
    %v229 = vlaneseq
    %v230 = vshrl.u32 %v229, 7
    %v231 = vsub.s32 0, %v230
    %v232 = vrot.slane %v98, %v231
    %v233 = vlaneseq
    %v234 = vshrl.u32 %v233, 7
    %v235 = vsub.s32 1, %v234
    %v236 = vrot.slane %v98, %v235
    %v237 = vlaneseq
    %v238 = vshrl.u32 %v237, 7
    %v239 = vsub.s32 2, %v238
    %v240 = vrot.slane %v98, %v239
    %v241 = vlaneseq
    %v242 = vshrl.u32 %v241, 7
    %v243 = vsub.s32 3, %v242
    %v244 = vrot.slane %v98, %v243
    %v249 = vmul.f32 %v100, %v232
    %v250 = vmul.f32 %v101, %v236
    %v251 = vmul.f32 %v102, %v240
    %v252 = vmul.f32 %v103, %v244
    %v253 = vmul.f32 %v104, %v232
    %v254 = vmul.f32 %v105, %v236
    %v255 = vmul.f32 %v106, %v240
    %v256 = vmul.f32 %v107, %v244
    %v257 = vmul.f32 %v108, %v232
    %v258 = vmul.f32 %v109, %v236
    %v259 = vmul.f32 %v110, %v240
    %v260 = vmul.f32 %v111, %v244
    %v261 = vmul.f32 %v112, %v232
    %v262 = vmul.f32 %v113, %v236
    %v263 = vmul.f32 %v114, %v240
    %v264 = vmul.f32 %v115, %v244
    %v265 = vmul.f32 %v116, %v232
    %v266 = vmul.f32 %v117, %v236
    %v267 = vmul.f32 %v118, %v240
    %v268 = vmul.f32 %v119, %v244
    %v269 = vmul.f32 %v120, %v232
    %v270 = vmul.f32 %v121, %v236
    %v271 = vmul.f32 %v122, %v240
    %v272 = vmul.f32 %v123, %v244
    %v273 = vmul.f32 %v124, %v232
    %v274 = vmul.f32 %v125, %v236
    %v275 = vmul.f32 %v126, %v240
    %v276 = vmul.f32 %v127, %v244
    %v277 = vmul.f32 %v128, %v232
    %v278 = vmul.f32 %v129, %v236
    %v279 = vmul.f32 %v130, %v240
    %v280 = vmul.f32 %v131, %v244
    %v281 = vmul.f32 %v132, %v232
    %v282 = vmul.f32 %v133, %v236
    %v283 = vmul.f32 %v134, %v240
    %v284 = vmul.f32 %v135, %v244
    %v285 = vmul.f32 %v136, %v232
    %v286 = vmul.f32 %v137, %v236
    %v287 = vmul.f32 %v138, %v240
    %v288 = vmul.f32 %v139, %v244
    %v289 = vmul.f32 %v140, %v232
    %v290 = vmul.f32 %v141, %v236
    %v291 = vmul.f32 %v142, %v240
    %v292 = vmul.f32 %v143, %v244
    %v293 = vmul.f32 %v144, %v232
    %v294 = vmul.f32 %v145, %v236
    %v295 = vmul.f32 %v146, %v240
    %v296 = vmul.f32 %v147, %v244
    %v297 = vmul.f32 %v148, %v232
    %v298 = vmul.f32 %v149, %v236
    %v299 = vmul.f32 %v150, %v240
    %v300 = vmul.f32 %v151, %v244
    %v301 = vmul.f32 %v152, %v232
    %v302 = vmul.f32 %v153, %v236
    %v303 = vmul.f32 %v154, %v240
    %v304 = vmul.f32 %v155, %v244
    %v305 = vmul.f32 %v156, %v232
    %v306 = vmul.f32 %v157, %v236
    %v307 = vmul.f32 %v158, %v240
    %v308 = vmul.f32 %v159, %v244
    %v309 = vmul.f32 %v160, %v232
    %v310 = vmul.f32 %v161, %v236
    %v311 = vmul.f32 %v162, %v240
    %v312 = vmul.f32 %v163, %v244
    %v314 = vlaneseq
    %v315 = vshrl.u32 %v314, 7
    %v316 = vsub.s32 0, %v315
    %v317 = vrot.slane %v99, %v316
    %v318 = vlaneseq
    %v319 = vshrl.u32 %v318, 7
    %v320 = vsub.s32 1, %v319
    %v321 = vrot.slane %v99, %v320
    %v322 = vlaneseq
    %v323 = vshrl.u32 %v322, 7
    %v324 = vsub.s32 2, %v323
    %v325 = vrot.slane %v99, %v324
    %v326 = vlaneseq
    %v327 = vshrl.u32 %v326, 7
    %v328 = vsub.s32 3, %v327
    %v329 = vrot.slane %v99, %v328
    %v334 = vmul.f32 %v164, %v317
    %v335 = vmul.f32 %v165, %v321
    %v336 = vmul.f32 %v166, %v325
    %v337 = vmul.f32 %v167, %v329
    %v338 = vmul.f32 %v168, %v317
    %v339 = vmul.f32 %v169, %v321
    %v340 = vmul.f32 %v170, %v325
    %v341 = vmul.f32 %v171, %v329
    %v342 = vmul.f32 %v172, %v317
    %v343 = vmul.f32 %v173, %v321
    %v344 = vmul.f32 %v174, %v325
    %v345 = vmul.f32 %v175, %v329
    %v346 = vmul.f32 %v176, %v317
    %v347 = vmul.f32 %v177, %v321
    %v348 = vmul.f32 %v178, %v325
    %v349 = vmul.f32 %v179, %v329
    %v350 = vmul.f32 %v180, %v317
    %v351 = vmul.f32 %v181, %v321
    %v352 = vmul.f32 %v182, %v325
    %v353 = vmul.f32 %v183, %v329
    %v354 = vmul.f32 %v184, %v317
    %v355 = vmul.f32 %v185, %v321
    %v356 = vmul.f32 %v186, %v325
    %v357 = vmul.f32 %v187, %v329
    %v358 = vmul.f32 %v188, %v317
    %v359 = vmul.f32 %v189, %v321
    %v360 = vmul.f32 %v190, %v325
    %v361 = vmul.f32 %v191, %v329
    %v362 = vmul.f32 %v192, %v317
    %v363 = vmul.f32 %v193, %v321
    %v364 = vmul.f32 %v194, %v325
    %v365 = vmul.f32 %v195, %v329
    %v366 = vmul.f32 %v196, %v317
    %v367 = vmul.f32 %v197, %v321
    %v368 = vmul.f32 %v198, %v325
    %v369 = vmul.f32 %v199, %v329
    %v370 = vmul.f32 %v200, %v317
    %v371 = vmul.f32 %v201, %v321
    %v372 = vmul.f32 %v202, %v325
    %v373 = vmul.f32 %v203, %v329
    %v374 = vmul.f32 %v204, %v317
    %v375 = vmul.f32 %v205, %v321
    %v376 = vmul.f32 %v206, %v325
    %v377 = vmul.f32 %v207, %v329
    %v378 = vmul.f32 %v208, %v317
    %v379 = vmul.f32 %v209, %v321
    %v380 = vmul.f32 %v210, %v325
    %v381 = vmul.f32 %v211, %v329
    %v382 = vmul.f32 %v212, %v317
    %v383 = vmul.f32 %v213, %v321
    %v384 = vmul.f32 %v214, %v325
    %v385 = vmul.f32 %v215, %v329
    %v386 = vmul.f32 %v216, %v317
    %v387 = vmul.f32 %v217, %v321
    %v388 = vmul.f32 %v218, %v325
    %v389 = vmul.f32 %v219, %v329
    %v390 = vmul.f32 %v220, %v317
    %v391 = vmul.f32 %v221, %v321
    %v392 = vmul.f32 %v222, %v325
    %v393 = vmul.f32 %v223, %v329
    %v394 = vmul.f32 %v224, %v317
    %v395 = vmul.f32 %v225, %v321
    %v396 = vmul.f32 %v226, %v325
    %v397 = vmul.f32 %v227, %v329
    %v398 = vsub.f32 %v249, %v334
    %v399 = vsub.f32 %v250, %v335
    %v400 = vsub.f32 %v251, %v336
    %v401 = vsub.f32 %v252, %v337
    %v402 = vsub.f32 %v253, %v338
    %v403 = vsub.f32 %v254, %v339
    %v404 = vsub.f32 %v255, %v340
    %v405 = vsub.f32 %v256, %v341
    %v406 = vsub.f32 %v257, %v342
    %v407 = vsub.f32 %v258, %v343
    %v408 = vsub.f32 %v259, %v344
    %v409 = vsub.f32 %v260, %v345
    %v410 = vsub.f32 %v261, %v346
    %v411 = vsub.f32 %v262, %v347
    %v412 = vsub.f32 %v263, %v348
    %v413 = vsub.f32 %v264, %v349
    %v414 = vsub.f32 %v265, %v350
    %v415 = vsub.f32 %v266, %v351
    %v416 = vsub.f32 %v267, %v352
    %v417 = vsub.f32 %v268, %v353
    %v418 = vsub.f32 %v269, %v354
    %v419 = vsub.f32 %v270, %v355
    %v420 = vsub.f32 %v271, %v356
    %v421 = vsub.f32 %v272, %v357
    %v422 = vsub.f32 %v273, %v358
    %v423 = vsub.f32 %v274, %v359
    %v424 = vsub.f32 %v275, %v360
    %v425 = vsub.f32 %v276, %v361
    %v426 = vsub.f32 %v277, %v362
    %v427 = vsub.f32 %v278, %v363
    %v428 = vsub.f32 %v279, %v364
    %v429 = vsub.f32 %v280, %v365
    %v430 = vsub.f32 %v281, %v366
    %v431 = vsub.f32 %v282, %v367
    %v432 = vsub.f32 %v283, %v368
    %v433 = vsub.f32 %v284, %v369
    %v434 = vsub.f32 %v285, %v370
    %v435 = vsub.f32 %v286, %v371
    %v436 = vsub.f32 %v287, %v372
    %v437 = vsub.f32 %v288, %v373
    %v438 = vsub.f32 %v289, %v374
    %v439 = vsub.f32 %v290, %v375
    %v440 = vsub.f32 %v291, %v376
    %v441 = vsub.f32 %v292, %v377
    %v442 = vsub.f32 %v293, %v378
    %v443 = vsub.f32 %v294, %v379
    %v444 = vsub.f32 %v295, %v380
    %v445 = vsub.f32 %v296, %v381
    %v446 = vsub.f32 %v297, %v382
    %v447 = vsub.f32 %v298, %v383
    %v448 = vsub.f32 %v299, %v384
    %v449 = vsub.f32 %v300, %v385
    %v450 = vsub.f32 %v301, %v386
    %v451 = vsub.f32 %v302, %v387
    %v452 = vsub.f32 %v303, %v388
    %v453 = vsub.f32 %v304, %v389
    %v454 = vsub.f32 %v305, %v390
    %v455 = vsub.f32 %v306, %v391
    %v456 = vsub.f32 %v307, %v392
    %v457 = vsub.f32 %v308, %v393
    %v458 = vsub.f32 %v309, %v394
    %v459 = vsub.f32 %v310, %v395
    %v460 = vsub.f32 %v311, %v396
    %v461 = vsub.f32 %v312, %v397
    %v462 = vmul.f32 %v100, %v317
    %v463 = vmul.f32 %v101, %v321
    %v464 = vmul.f32 %v102, %v325
    %v465 = vmul.f32 %v103, %v329
    %v466 = vmul.f32 %v104, %v317
    %v467 = vmul.f32 %v105, %v321
    %v468 = vmul.f32 %v106, %v325
    %v469 = vmul.f32 %v107, %v329
    %v470 = vmul.f32 %v108, %v317
    %v471 = vmul.f32 %v109, %v321
    %v472 = vmul.f32 %v110, %v325
    %v473 = vmul.f32 %v111, %v329
    %v474 = vmul.f32 %v112, %v317
    %v475 = vmul.f32 %v113, %v321
    %v476 = vmul.f32 %v114, %v325
    %v477 = vmul.f32 %v115, %v329
    %v478 = vmul.f32 %v116, %v317
    %v479 = vmul.f32 %v117, %v321
    %v480 = vmul.f32 %v118, %v325
    %v481 = vmul.f32 %v119, %v329
    %v482 = vmul.f32 %v120, %v317
    %v483 = vmul.f32 %v121, %v321
    %v484 = vmul.f32 %v122, %v325
    %v485 = vmul.f32 %v123, %v329
    %v486 = vmul.f32 %v124, %v317
    %v487 = vmul.f32 %v125, %v321
    %v488 = vmul.f32 %v126, %v325
    %v489 = vmul.f32 %v127, %v329
    %v490 = vmul.f32 %v128, %v317
    %v491 = vmul.f32 %v129, %v321
    %v492 = vmul.f32 %v130, %v325
    %v493 = vmul.f32 %v131, %v329
    %v494 = vmul.f32 %v132, %v317
    %v495 = vmul.f32 %v133, %v321
    %v496 = vmul.f32 %v134, %v325
    %v497 = vmul.f32 %v135, %v329
    %v498 = vmul.f32 %v136, %v317
    %v499 = vmul.f32 %v137, %v321
    %v500 = vmul.f32 %v138, %v325
    %v501 = vmul.f32 %v139, %v329
    %v502 = vmul.f32 %v140, %v317
    %v503 = vmul.f32 %v141, %v321
    %v504 = vmul.f32 %v142, %v325
    %v505 = vmul.f32 %v143, %v329
    %v506 = vmul.f32 %v144, %v317
    %v507 = vmul.f32 %v145, %v321
    %v508 = vmul.f32 %v146, %v325
    %v509 = vmul.f32 %v147, %v329
    %v510 = vmul.f32 %v148, %v317
    %v511 = vmul.f32 %v149, %v321
    %v512 = vmul.f32 %v150, %v325
    %v513 = vmul.f32 %v151, %v329
    %v514 = vmul.f32 %v152, %v317
    %v515 = vmul.f32 %v153, %v321
    %v516 = vmul.f32 %v154, %v325
    %v517 = vmul.f32 %v155, %v329
    %v518 = vmul.f32 %v156, %v317
    %v519 = vmul.f32 %v157, %v321
    %v520 = vmul.f32 %v158, %v325
    %v521 = vmul.f32 %v159, %v329
    %v522 = vmul.f32 %v160, %v317
    %v523 = vmul.f32 %v161, %v321
    %v524 = vmul.f32 %v162, %v325
    %v525 = vmul.f32 %v163, %v329
    %v526 = vmul.f32 %v164, %v232
    %v527 = vmul.f32 %v165, %v236
    %v528 = vmul.f32 %v166, %v240
    %v529 = vmul.f32 %v167, %v244
    %v530 = vmul.f32 %v168, %v232
    %v531 = vmul.f32 %v169, %v236
    %v532 = vmul.f32 %v170, %v240
    %v533 = vmul.f32 %v171, %v244
    %v534 = vmul.f32 %v172, %v232
    %v535 = vmul.f32 %v173, %v236
    %v536 = vmul.f32 %v174, %v240
    %v537 = vmul.f32 %v175, %v244
    %v538 = vmul.f32 %v176, %v232
    %v539 = vmul.f32 %v177, %v236
    %v540 = vmul.f32 %v178, %v240
    %v541 = vmul.f32 %v179, %v244
    %v542 = vmul.f32 %v180, %v232
    %v543 = vmul.f32 %v181, %v236
    %v544 = vmul.f32 %v182, %v240
    %v545 = vmul.f32 %v183, %v244
    %v546 = vmul.f32 %v184, %v232
    %v547 = vmul.f32 %v185, %v236
    %v548 = vmul.f32 %v186, %v240
    %v549 = vmul.f32 %v187, %v244
    %v550 = vmul.f32 %v188, %v232
    %v551 = vmul.f32 %v189, %v236
    %v552 = vmul.f32 %v190, %v240
    %v553 = vmul.f32 %v191, %v244
    %v554 = vmul.f32 %v192, %v232
    %v555 = vmul.f32 %v193, %v236
    %v556 = vmul.f32 %v194, %v240
    %v557 = vmul.f32 %v195, %v244
    %v558 = vmul.f32 %v196, %v232
    %v559 = vmul.f32 %v197, %v236
    %v560 = vmul.f32 %v198, %v240
    %v561 = vmul.f32 %v199, %v244
    %v562 = vmul.f32 %v200, %v232
    %v563 = vmul.f32 %v201, %v236
    %v564 = vmul.f32 %v202, %v240
    %v565 = vmul.f32 %v203, %v244
    %v566 = vmul.f32 %v204, %v232
    %v567 = vmul.f32 %v205, %v236
    %v568 = vmul.f32 %v206, %v240
    %v569 = vmul.f32 %v207, %v244
    %v570 = vmul.f32 %v208, %v232
    %v571 = vmul.f32 %v209, %v236
    %v572 = vmul.f32 %v210, %v240
    %v573 = vmul.f32 %v211, %v244
    %v574 = vmul.f32 %v212, %v232
    %v575 = vmul.f32 %v213, %v236
    %v576 = vmul.f32 %v214, %v240
    %v577 = vmul.f32 %v215, %v244
    %v578 = vmul.f32 %v216, %v232
    %v579 = vmul.f32 %v217, %v236
    %v580 = vmul.f32 %v218, %v240
    %v581 = vmul.f32 %v219, %v244
    %v582 = vmul.f32 %v220, %v232
    %v583 = vmul.f32 %v221, %v236
    %v584 = vmul.f32 %v222, %v240
    %v585 = vmul.f32 %v223, %v244
    %v586 = vmul.f32 %v224, %v232
    %v587 = vmul.f32 %v225, %v236
    %v588 = vmul.f32 %v226, %v240
    %v589 = vmul.f32 %v227, %v244
    %v590 = vadd.f32 %v462, %v526
    %v591 = vadd.f32 %v463, %v527
    %v592 = vadd.f32 %v464, %v528
    %v593 = vadd.f32 %v465, %v529
    %v594 = vadd.f32 %v466, %v530
    %v595 = vadd.f32 %v467, %v531
    %v596 = vadd.f32 %v468, %v532
    %v597 = vadd.f32 %v469, %v533
    %v598 = vadd.f32 %v470, %v534
    %v599 = vadd.f32 %v471, %v535
    %v600 = vadd.f32 %v472, %v536
    %v601 = vadd.f32 %v473, %v537
    %v602 = vadd.f32 %v474, %v538
    %v603 = vadd.f32 %v475, %v539
    %v604 = vadd.f32 %v476, %v540
    %v605 = vadd.f32 %v477, %v541
    %v606 = vadd.f32 %v478, %v542
    %v607 = vadd.f32 %v479, %v543
    %v608 = vadd.f32 %v480, %v544
    %v609 = vadd.f32 %v481, %v545
    %v610 = vadd.f32 %v482, %v546
    %v611 = vadd.f32 %v483, %v547
    %v612 = vadd.f32 %v484, %v548
    %v613 = vadd.f32 %v485, %v549
    %v614 = vadd.f32 %v486, %v550
    %v615 = vadd.f32 %v487, %v551
    %v616 = vadd.f32 %v488, %v552
    %v617 = vadd.f32 %v489, %v553
    %v618 = vadd.f32 %v490, %v554
    %v619 = vadd.f32 %v491, %v555
    %v620 = vadd.f32 %v492, %v556
    %v621 = vadd.f32 %v493, %v557
    %v622 = vadd.f32 %v494, %v558
    %v623 = vadd.f32 %v495, %v559
    %v624 = vadd.f32 %v496, %v560
    %v625 = vadd.f32 %v497, %v561
    %v626 = vadd.f32 %v498, %v562
    %v627 = vadd.f32 %v499, %v563
    %v628 = vadd.f32 %v500, %v564
    %v629 = vadd.f32 %v501, %v565
    %v630 = vadd.f32 %v502, %v566
    %v631 = vadd.f32 %v503, %v567
    %v632 = vadd.f32 %v504, %v568
    %v633 = vadd.f32 %v505, %v569
    %v634 = vadd.f32 %v506, %v570
    %v635 = vadd.f32 %v507, %v571
    %v636 = vadd.f32 %v508, %v572
    %v637 = vadd.f32 %v509, %v573
    %v638 = vadd.f32 %v510, %v574
    %v639 = vadd.f32 %v511, %v575
    %v640 = vadd.f32 %v512, %v576
    %v641 = vadd.f32 %v513, %v577
    %v642 = vadd.f32 %v514, %v578
    %v643 = vadd.f32 %v515, %v579
    %v644 = vadd.f32 %v516, %v580
    %v645 = vadd.f32 %v517, %v581
    %v646 = vadd.f32 %v518, %v582
    %v647 = vadd.f32 %v519, %v583
    %v648 = vadd.f32 %v520, %v584
    %v649 = vadd.f32 %v521, %v585
    %v650 = vadd.f32 %v522, %v586
    %v651 = vadd.f32 %v523, %v587
    %v652 = vadd.f32 %v524, %v588
    %v653 = vadd.f32 %v525, %v589
    %v654 = vld [vmem:[#allocation7] sm:$0xff]
    %v655 = vld [vmem:[#allocation7 + $0x8] sm:$0xff]
    %v656 = vld [vmem:[#allocation7 + $0x10] sm:$0xff]
    %v657 = vld [vmem:[#allocation7 + $0x18] sm:$0xff]
    %658 = vmatprep.subr.mxu0 %v399
    %659 = vmatpush1.xpose.msra.mxu0 %v398
    %660 = vmatprep.subr.mxu0 %v403
    %661 = vmatpush1.xpose.msra.mxu0 %v402
    %662 = vmatprep.subr.mxu0 %v407
    %663 = vmatpush1.xpose.msra.mxu0 %v406
    %664 = vmatprep.subr.mxu0 %v411
    %665 = vmatpush1.xpose.msra.mxu0 %v410
    %666 = vmatprep.subr.mxu0 %v415
    %667 = vmatpush1.xpose.msra.mxu0 %v414
    %668 = vmatprep.subr.mxu0 %v419
    %669 = vmatpush1.xpose.msra.mxu0 %v418
    %670 = vmatprep.subr.mxu0 %v423
    %671 = vmatpush1.xpose.msra.mxu0 %v422
    %672 = vmatprep.subr.mxu0 %v427
    %673 = vmatpush1.xpose.msra.mxu0 %v426
    %674 = vmatprep.subr.mxu0 %v431
    %675 = vmatpush1.xpose.msra.mxu0 %v430
    %676 = vmatprep.subr.mxu0 %v435
    %677 = vmatpush1.xpose.msra.mxu0 %v434
    %678 = vmatprep.subr.mxu0 %v439
    %679 = vmatpush1.xpose.msra.mxu0 %v438
    %680 = vmatprep.subr.mxu0 %v443
    %681 = vmatpush1.xpose.msra.mxu0 %v442
    %682 = vmatprep.subr.mxu0 %v447
    %683 = vmatpush1.xpose.msra.mxu0 %v446
    %684 = vmatprep.subr.mxu0 %v451
    %685 = vmatpush1.xpose.msra.mxu0 %v450
    %686 = vmatprep.subr.mxu0 %v455
    %687 = vmatpush1.xpose.msra.mxu0 %v454
    %688 = vmatprep.subr.mxu0 %v459
    %689 = vmatpush1.xpose.msra.mxu0 %v458
    %690 = vmatprep.subr.mxu0 0.0
    %691 = vmatpush1.xpose.msra.mxu0 0.0
    %692 = vmatprep.subr.mxu0 0.0
    %693 = vmatpush1.xpose.msra.mxu0 0.0
    %694 = vmatprep.subr.mxu0 0.0
    %695 = vmatpush1.xpose.msra.mxu0 0.0
    %696 = vmatprep.subr.mxu0 0.0
    %697 = vmatpush1.xpose.msra.mxu0 0.0
    %698 = vmatprep.subr.mxu0 0.0
    %699 = vmatpush1.xpose.msra.mxu0 0.0
    %700 = vmatprep.subr.mxu0 0.0
    %701 = vmatpush1.xpose.msra.mxu0 0.0
    %702 = vmatprep.subr.mxu0 0.0
    %703 = vmatpush1.xpose.msra.mxu0 0.0
    %704 = vmatprep.subr.mxu0 0.0
    %705 = vmatpush1.xpose.msra.mxu0 0.0
    %706 = vmatprep.subr.mxu0 0.0
    %707 = vmatpush1.xpose.msra.mxu0 0.0
    %708 = vmatprep.subr.mxu0 0.0
    %709 = vmatpush1.xpose.msra.mxu0 0.0
    %710 = vmatprep.subr.mxu0 0.0
    %711 = vmatpush1.xpose.msra.mxu0 0.0
    %712 = vmatprep.subr.mxu0 0.0
    %713 = vmatpush1.xpose.msra.mxu0 0.0
    %714 = vmatprep.subr.mxu0 0.0
    %715 = vmatpush1.xpose.msra.mxu0 0.0
    %716 = vmatprep.subr.mxu0 0.0
    %717 = vmatpush1.xpose.msra.mxu0 0.0
    %718 = vmatprep.subr.mxu0 0.0
    %719 = vmatpush1.xpose.msra.mxu0 0.0
    %720 = vmatprep.subr.mxu0 0.0
    %721 = vmatpush1.xpose.msra.mxu0 0.0
    %722 = vmatprep.mubr.f32.mxu0 %v655
    %723 = vmatmul.mubr.f32.gmra.mrb[0].mxu0 %v654
    %v724 = vpop.f32.mrb[0].mxu0
    %v725 = vadd.f32 0.0, %v724
    %v726 = vpop.f32.mrb[0].mxu0
    %727 = vdwg.mxu0
    %728 = vmatprep.subr.mxu0 %v401
    %729 = vmatpush1.xpose.msra.mxu0 %v400
    %730 = vmatprep.subr.mxu0 %v405
    %731 = vmatpush1.xpose.msra.mxu0 %v404
    %732 = vmatprep.subr.mxu0 %v409
    %733 = vmatpush1.xpose.msra.mxu0 %v408
    %734 = vmatprep.subr.mxu0 %v413
    %735 = vmatpush1.xpose.msra.mxu0 %v412
    %736 = vmatprep.subr.mxu0 %v417
    %737 = vmatpush1.xpose.msra.mxu0 %v416
    %738 = vmatprep.subr.mxu0 %v421
    %739 = vmatpush1.xpose.msra.mxu0 %v420
    %740 = vmatprep.subr.mxu0 %v425
    %741 = vmatpush1.xpose.msra.mxu0 %v424
    %742 = vmatprep.subr.mxu0 %v429
    %743 = vmatpush1.xpose.msra.mxu0 %v428
    %744 = vmatprep.subr.mxu0 %v433
    %745 = vmatpush1.xpose.msra.mxu0 %v432
    %746 = vmatprep.subr.mxu0 %v437
    %747 = vmatpush1.xpose.msra.mxu0 %v436
    %748 = vmatprep.subr.mxu0 %v441
    %749 = vmatpush1.xpose.msra.mxu0 %v440
    %750 = vmatprep.subr.mxu0 %v445
    %751 = vmatpush1.xpose.msra.mxu0 %v444
    %752 = vmatprep.subr.mxu0 %v449
    %753 = vmatpush1.xpose.msra.mxu0 %v448
    %754 = vmatprep.subr.mxu0 %v453
    %755 = vmatpush1.xpose.msra.mxu0 %v452
    %756 = vmatprep.subr.mxu0 %v457
    %757 = vmatpush1.xpose.msra.mxu0 %v456
    %758 = vmatprep.subr.mxu0 %v461
    %759 = vmatpush1.xpose.msra.mxu0 %v460
    %760 = vmatprep.subr.mxu0 0.0
    %761 = vmatpush1.xpose.msra.mxu0 0.0
    %762 = vmatprep.subr.mxu0 0.0
    %763 = vmatpush1.xpose.msra.mxu0 0.0
    %764 = vmatprep.subr.mxu0 0.0
    %765 = vmatpush1.xpose.msra.mxu0 0.0
    %766 = vmatprep.subr.mxu0 0.0
    %767 = vmatpush1.xpose.msra.mxu0 0.0
    %768 = vmatprep.subr.mxu0 0.0
    %769 = vmatpush1.xpose.msra.mxu0 0.0
    %770 = vmatprep.subr.mxu0 0.0
    %771 = vmatpush1.xpose.msra.mxu0 0.0
    %772 = vmatprep.subr.mxu0 0.0
    %773 = vmatpush1.xpose.msra.mxu0 0.0
    %774 = vmatprep.subr.mxu0 0.0
    %775 = vmatpush1.xpose.msra.mxu0 0.0
    %776 = vmatprep.subr.mxu0 0.0
    %777 = vmatpush1.xpose.msra.mxu0 0.0
    %778 = vmatprep.subr.mxu0 0.0
    %779 = vmatpush1.xpose.msra.mxu0 0.0
    %780 = vmatprep.subr.mxu0 0.0
    %781 = vmatpush1.xpose.msra.mxu0 0.0
    %782 = vmatprep.subr.mxu0 0.0
    %783 = vmatpush1.xpose.msra.mxu0 0.0
    %784 = vmatprep.subr.mxu0 0.0
    %785 = vmatpush1.xpose.msra.mxu0 0.0
    %786 = vmatprep.subr.mxu0 0.0
    %787 = vmatpush1.xpose.msra.mxu0 0.0
    %788 = vmatprep.subr.mxu0 0.0
    %789 = vmatpush1.xpose.msra.mxu0 0.0
    %790 = vmatprep.subr.mxu0 0.0
    %791 = vmatpush1.xpose.msra.mxu0 0.0
    %792 = vmatprep.mubr.f32.mxu0 %v657
    %793 = vmatmul.mubr.f32.gmra.mrb[0].mxu0 %v656
    %v794 = vpop.f32.mrb[0].mxu0
    %v795 = vadd.f32 %v725, %v794
    %v796 = vpop.f32.mrb[0].mxu0
    %797 = vdwg.mxu0
    %v798 = vld [vmem:[#allocation8] sm:$0xff]
    %v799 = vld [vmem:[#allocation8 + $0x8] sm:$0xff]
    %v800 = vld [vmem:[#allocation8 + $0x10] sm:$0xff]
    %v801 = vld [vmem:[#allocation8 + $0x18] sm:$0xff]
    %802 = vmatprep.subr.mxu0 %v591
    %803 = vmatpush1.xpose.msra.mxu0 %v590
    %804 = vmatprep.subr.mxu0 %v595
    %805 = vmatpush1.xpose.msra.mxu0 %v594
    %806 = vmatprep.subr.mxu0 %v599
    %807 = vmatpush1.xpose.msra.mxu0 %v598
    %808 = vmatprep.subr.mxu0 %v603
    %809 = vmatpush1.xpose.msra.mxu0 %v602
    %810 = vmatprep.subr.mxu0 %v607
    %811 = vmatpush1.xpose.msra.mxu0 %v606
    %812 = vmatprep.subr.mxu0 %v611
    %813 = vmatpush1.xpose.msra.mxu0 %v610
    %814 = vmatprep.subr.mxu0 %v615
    %815 = vmatpush1.xpose.msra.mxu0 %v614
    %816 = vmatprep.subr.mxu0 %v619
    %817 = vmatpush1.xpose.msra.mxu0 %v618
    %818 = vmatprep.subr.mxu0 %v623
    %819 = vmatpush1.xpose.msra.mxu0 %v622
    %820 = vmatprep.subr.mxu0 %v627
    %821 = vmatpush1.xpose.msra.mxu0 %v626
    %822 = vmatprep.subr.mxu0 %v631
    %823 = vmatpush1.xpose.msra.mxu0 %v630
    %824 = vmatprep.subr.mxu0 %v635
    %825 = vmatpush1.xpose.msra.mxu0 %v634
    %826 = vmatprep.subr.mxu0 %v639
    %827 = vmatpush1.xpose.msra.mxu0 %v638
    %828 = vmatprep.subr.mxu0 %v643
    %829 = vmatpush1.xpose.msra.mxu0 %v642
    %830 = vmatprep.subr.mxu0 %v647
    %831 = vmatpush1.xpose.msra.mxu0 %v646
    %832 = vmatprep.subr.mxu0 %v651
    %833 = vmatpush1.xpose.msra.mxu0 %v650
    %834 = vmatprep.subr.mxu0 0.0
    %835 = vmatpush1.xpose.msra.mxu0 0.0
    %836 = vmatprep.subr.mxu0 0.0
    %837 = vmatpush1.xpose.msra.mxu0 0.0
    %838 = vmatprep.subr.mxu0 0.0
    %839 = vmatpush1.xpose.msra.mxu0 0.0
    %840 = vmatprep.subr.mxu0 0.0
    %841 = vmatpush1.xpose.msra.mxu0 0.0
    %842 = vmatprep.subr.mxu0 0.0
    %843 = vmatpush1.xpose.msra.mxu0 0.0
    %844 = vmatprep.subr.mxu0 0.0
    %845 = vmatpush1.xpose.msra.mxu0 0.0
    %846 = vmatprep.subr.mxu0 0.0
    %847 = vmatpush1.xpose.msra.mxu0 0.0
    %848 = vmatprep.subr.mxu0 0.0
    %849 = vmatpush1.xpose.msra.mxu0 0.0
    %850 = vmatprep.subr.mxu0 0.0
    %851 = vmatpush1.xpose.msra.mxu0 0.0
    %852 = vmatprep.subr.mxu0 0.0
    %853 = vmatpush1.xpose.msra.mxu0 0.0
    %854 = vmatprep.subr.mxu0 0.0
    %855 = vmatpush1.xpose.msra.mxu0 0.0
    %856 = vmatprep.subr.mxu0 0.0
    %857 = vmatpush1.xpose.msra.mxu0 0.0
    %858 = vmatprep.subr.mxu0 0.0
    %859 = vmatpush1.xpose.msra.mxu0 0.0
    %860 = vmatprep.subr.mxu0 0.0
    %861 = vmatpush1.xpose.msra.mxu0 0.0
    %862 = vmatprep.subr.mxu0 0.0
    %863 = vmatpush1.xpose.msra.mxu0 0.0
    %864 = vmatprep.subr.mxu0 0.0
    %865 = vmatpush1.xpose.msra.mxu0 0.0
    %866 = vmatprep.mubr.f32.mxu0 %v799
    %867 = vmatmul.mubr.f32.gmra.mrb[0].mxu0 %v798
    %v868 = vpop.f32.mrb[0].mxu0
    %v869 = vadd.f32 0.0, %v868
    %v870 = vpop.f32.mrb[0].mxu0
    %871 = vdwg.mxu0
    %872 = vmatprep.subr.mxu0 %v593
    %873 = vmatpush1.xpose.msra.mxu0 %v592
    %874 = vmatprep.subr.mxu0 %v597
    %875 = vmatpush1.xpose.msra.mxu0 %v596
    %876 = vmatprep.subr.mxu0 %v601
    %877 = vmatpush1.xpose.msra.mxu0 %v600
    %878 = vmatprep.subr.mxu0 %v605
    %879 = vmatpush1.xpose.msra.mxu0 %v604
    %880 = vmatprep.subr.mxu0 %v609
    %881 = vmatpush1.xpose.msra.mxu0 %v608
    %882 = vmatprep.subr.mxu0 %v613
    %883 = vmatpush1.xpose.msra.mxu0 %v612
    %884 = vmatprep.subr.mxu0 %v617
    %885 = vmatpush1.xpose.msra.mxu0 %v616
    %886 = vmatprep.subr.mxu0 %v621
    %887 = vmatpush1.xpose.msra.mxu0 %v620
    %888 = vmatprep.subr.mxu0 %v625
    %889 = vmatpush1.xpose.msra.mxu0 %v624
    %890 = vmatprep.subr.mxu0 %v629
    %891 = vmatpush1.xpose.msra.mxu0 %v628
    %892 = vmatprep.subr.mxu0 %v633
    %893 = vmatpush1.xpose.msra.mxu0 %v632
    %894 = vmatprep.subr.mxu0 %v637
    %895 = vmatpush1.xpose.msra.mxu0 %v636
    %896 = vmatprep.subr.mxu0 %v641
    %897 = vmatpush1.xpose.msra.mxu0 %v640
    %898 = vmatprep.subr.mxu0 %v645
    %899 = vmatpush1.xpose.msra.mxu0 %v644
    %900 = vmatprep.subr.mxu0 %v649
    %901 = vmatpush1.xpose.msra.mxu0 %v648
    %902 = vmatprep.subr.mxu0 %v653
    %903 = vmatpush1.xpose.msra.mxu0 %v652
    %904 = vmatprep.subr.mxu0 0.0
    %905 = vmatpush1.xpose.msra.mxu0 0.0
    %906 = vmatprep.subr.mxu0 0.0
    %907 = vmatpush1.xpose.msra.mxu0 0.0
    %908 = vmatprep.subr.mxu0 0.0
    %909 = vmatpush1.xpose.msra.mxu0 0.0
    %910 = vmatprep.subr.mxu0 0.0
    %911 = vmatpush1.xpose.msra.mxu0 0.0
    %912 = vmatprep.subr.mxu0 0.0
    %913 = vmatpush1.xpose.msra.mxu0 0.0
    %914 = vmatprep.subr.mxu0 0.0
    %915 = vmatpush1.xpose.msra.mxu0 0.0
    %916 = vmatprep.subr.mxu0 0.0
    %917 = vmatpush1.xpose.msra.mxu0 0.0
    %918 = vmatprep.subr.mxu0 0.0
    %919 = vmatpush1.xpose.msra.mxu0 0.0
    %920 = vmatprep.subr.mxu0 0.0
    %921 = vmatpush1.xpose.msra.mxu0 0.0
    %922 = vmatprep.subr.mxu0 0.0
    %923 = vmatpush1.xpose.msra.mxu0 0.0
    %924 = vmatprep.subr.mxu0 0.0
    %925 = vmatpush1.xpose.msra.mxu0 0.0
    %926 = vmatprep.subr.mxu0 0.0
    %927 = vmatpush1.xpose.msra.mxu0 0.0
    %928 = vmatprep.subr.mxu0 0.0
    %929 = vmatpush1.xpose.msra.mxu0 0.0
    %930 = vmatprep.subr.mxu0 0.0
    %931 = vmatpush1.xpose.msra.mxu0 0.0
    %932 = vmatprep.subr.mxu0 0.0
    %933 = vmatpush1.xpose.msra.mxu0 0.0
    %934 = vmatprep.subr.mxu0 0.0
    %935 = vmatpush1.xpose.msra.mxu0 0.0
    %936 = vmatprep.mubr.f32.mxu0 %v801
    %937 = vmatmul.mubr.f32.gmra.mrb[0].mxu0 %v800
    %v938 = vpop.f32.mrb[0].mxu0
    %v939 = vadd.f32 %v869, %v938
    %v940 = vpop.f32.mrb[0].mxu0
    %941 = vdwg.mxu0
    %v942 = vsub.f32 %v795, %v939
    %943 = vst [vmem:[#allocation13] sm:$0xff] %v942
    // Predicated region
    $region50: #{tpu_custom_call.1} parent=1 // pred_check
      _
    $region51: #{tpu_custom_call.1} parent=1 // pred_check_branch
      %945 = sbr.rel (0) target = $region53
    $region52: #{tpu_custom_call.1} parent=1 // pred_region
      %s947 = ssub.s32 128, 128
      %948 = vsyncadd [#allocation4], %s947
      %s950 = sshll.u32 [#allocation13], 4
      %s951 = int_to_ptr.vmem [resolvable:$true] %s950
      %953 = dma.vmem_to_hbm [thread:$0]  %s951, 128, %s6, [#allocation4]
    $region53: #{tpu_custom_call.1} parent=1 // pred_fallthru
      _
    // Predicated region
    $region54: #{tpu_custom_call.1} parent=1 // pred_check
      _
    $region55: #{tpu_custom_call.1} parent=1 // pred_check_branch
      %955 = sbr.rel (0) target = $region57
    $region56: #{tpu_custom_call.1} parent=1 // pred_region
      %956 = dma.done [#allocation4], 128
    $region57: #{tpu_custom_call.1} parent=1 // pred_fallthru
      _
    %957 = vsyncpa [#allocation3], 1
    %958 = vsyncpa [#allocation6], 1
    %959 = vsyncpa [#allocation9], 1
    %960 = vsyncpa [#allocation12], 1
    %961 = vsyncpa [#allocation4], 1

</llo_original>
